<compile_context>
chip_gen: v7x
topology: tpu7x:2x2x1
jax: 0.10.0
libtpu: 0.0.40
codegen_flags: <defaults>
</compile_context>

<pallas_src>
import functools

import jax
import jax.numpy as jnp
from jax.experimental import pallas as pl
from jax.experimental.pallas import tpu as pltpu


def _round_up(x, m):
    return ((x + m - 1) // m) * m


def _patch_embed_kernel(x_ref, w_ref, b_ref, o_ref):
    # One M-tile: (tile_m, K) @ (K, E) on the MXU, f32 accumulate, + bias.
    acc = jnp.dot(x_ref[...], w_ref[...], preferred_element_type=jnp.float32)
    o_ref[...] = (acc + b_ref[...]).astype(o_ref.dtype)


@functools.partial(jax.jit, static_argnames=("patch_size", "tile_m", "out_dtype"))
def patch_embed_ts_forward(x, weight, bias, patch_size, *, tile_m=512, out_dtype=None):
    """Pallas implementation of PatchEmbed_ts.forward.

    Args:
      x:       (bs, L) float32
      weight:  (E, 1, patch_size) float32  -- same layout as nn.Conv1d weight
      bias:    (E,) float32
      tile_m:  target rows of the flattened (batch, patch) dimension per grid step.
      out_dtype: output dtype (default: x.dtype). bf16 halves output HBM traffic.
    Returns:
      (bs, P, E) with P = (L - patch_size)//patch_size + 1
    """
    bs, L = x.shape
    E = weight.shape[0]
    K = patch_size
    stride = patch_size
    P = (L - patch_size) // stride + 1
    M = bs * P
    out_dtype = x.dtype if out_dtype is None else out_dtype

    # Patch extraction. When L == P*K (e.g. 387 = 43*9) this is a free row-major
    # reinterpretation of the contiguous (bs, L) buffer; otherwise a small slice.
    x_valid = x if L == P * K else x[:, : P * K]
    x_patches = x_valid.reshape(M, K)

    # Weight as a (K, E) projection matrix; bias as a broadcastable row.
    w2d = weight.reshape(E, K).T  # (K, E)
    b2d = bias.reshape(1, E)

    # ---- Grid sizing ---------------------------------------------------------
    # Guarantee >= 2 grid steps (pipelining: out-tile writeback overlaps next
    # tile's compute) and an even number of steps (balanced split across v7x's
    # two TensorCores via the "parallel" axis). Tiles are multiples of 8 sublanes.
    m_pad8 = _round_up(max(M, 1), 8)
    cap = max(8, min(_round_up(tile_m, 8), m_pad8))        # user-requested ceiling
    n_steps = _round_up(max(2, pl.cdiv(m_pad8, cap)), 2)   # >= 2 and even
    tile_m = max(8, _round_up(pl.cdiv(M, n_steps), 8))
    grid_m = pl.cdiv(M, tile_m)                            # may fall back to 1 only if M <= 8

    cost = pl.CostEstimate(
        flops=2 * M * K * E,
        transcendentals=0,
        bytes_accessed=x_patches.dtype.itemsize * (M * K)
        + w2d.dtype.itemsize * (K * E + E)
        + jnp.dtype(out_dtype).itemsize * (M * E),
    )

    out = pl.pallas_call(
        _patch_embed_kernel,
        out_shape=jax.ShapeDtypeStruct((M, E), out_dtype),
        grid=(grid_m,),
        in_specs=[
            # x tile marches over M; weight/bias stay resident across the grid.
            pl.BlockSpec((tile_m, K), lambda i: (i, 0)),
            pl.BlockSpec((K, E), lambda i: (0, 0)),
            pl.BlockSpec((1, E), lambda i: (0, 0)),
        ],
        out_specs=pl.BlockSpec((tile_m, E), lambda i: (i, 0)),
        compiler_params=pltpu.CompilerParams(
            # M-tiles are fully independent -> shard across TensorCores on v7x.
            dimension_semantics=("parallel",),
            # Footprint is a few MiB even at tile_m=1024, E=768; safe on v5e/v6e/v7x.
            vmem_limit_bytes=32 * 1024 * 1024,
        ),
        cost_estimate=cost,
    )(x_patches, w2d, b2d)

    return out.reshape(bs, P, E)


def _reference(x, weight, bias, patch_size):
    bs, L = x.shape
    E = weight.shape[0]
    P = (L - patch_size) // patch_size + 1
    xp = x[:, : P * patch_size].reshape(bs, P, patch_size)
    w2d = weight.reshape(E, patch_size)
    return jnp.einsum("bpk,ek->bpe", xp, w2d) + bias[None, None, :]


if __name__ == "__main__":
    # Module-default geometry (ts_len=387, patch=9 -> P=43), small batch & embed.
    bs = 8
    ts_len = 387
    patch_size = 9
    embed_dim = 32

    key = jax.random.PRNGKey(0)
    kx, kw, kb = jax.random.split(key, 3)

    x = jax.random.normal(kx, (bs, ts_len), dtype=jnp.float32)

    # Deterministic parameter init mimicking nn.Conv1d default (uniform in
    # [-1/sqrt(fan_in), 1/sqrt(fan_in)] with fan_in = in_channels * kernel_size).
    fan_in = 1 * patch_size
    bound = 1.0 / jnp.sqrt(jnp.float32(fan_in))
    weight = jax.random.uniform(
        kw, (embed_dim, 1, patch_size), dtype=jnp.float32, minval=-bound, maxval=bound
    )
    bias = jax.random.uniform(
        kb, (embed_dim,), dtype=jnp.float32, minval=-bound, maxval=bound
    )

    # tile_m=128 here so the small test exercises a multi-step grid
    # (M=344 -> 4 tiles of 88 rows, last one partial); production default 512
    # still yields an even 2-step grid at this geometry.
    out = patch_embed_ts_forward(x, weight, bias, patch_size, tile_m=128)
    out = jax.block_until_ready(out)

    P = (ts_len - patch_size) // patch_size + 1
    ref = _reference(x, weight, bias, patch_size)
    assert out.shape == (bs, P, embed_dim), out.shape
    assert jnp.allclose(out, ref, atol=1e-5, rtol=1e-5)

    # Also exercise the default tile_m path (2 balanced grid steps at M=344).
    out2 = jax.block_until_ready(patch_embed_ts_forward(x, weight, bias, patch_size))
    assert jnp.allclose(out2, ref, atol=1e-5, rtol=1e-5)

    print("KERNEL_OK")
</pallas_src>

<mosaic_0001>
module attributes {stable_mosaic.version = 11 : i64} {
  func.func @_patch_embed_kernel(%arg0: i32, %arg1: memref<88x9xf32, #tpu.memory_space<vmem>>, %arg2: memref<9x32xf32, #tpu.memory_space<vmem>>, %arg3: memref<1x32xf32, #tpu.memory_space<vmem>>, %arg4: memref<88x32xf32, #tpu.memory_space<vmem>>) attributes {dimension_semantics = [#tpu.dimension_semantics<parallel>], iteration_bounds = array<i64: 4>, scalar_prefetch = 0 : i64, scratch_operands = 0 : i64, tpu.core_type = #tpu.core_type<tc>, window_params = [{transform_indices = @transform_0, window_bounds = array<i64: 88, 9>}, {pipeline_mode = #tpu.pipeline_mode<synchronous>, transform_indices = @transform_1, window_bounds = array<i64: 9, 32>}, {pipeline_mode = #tpu.pipeline_mode<synchronous>, transform_indices = @transform_2, window_bounds = array<i64: 1, 32>}, {transform_indices = @transform_3, window_bounds = array<i64: 88, 32>}]} {
    %c0 = arith.constant 0 : index
    %c0_0 = arith.constant 0 : index
    %0 = vector.load %arg1[%c0, %c0_0] : memref<88x9xf32, #tpu.memory_space<vmem>>, vector<88x9xf32>
    %c0_1 = arith.constant 0 : index
    %c0_2 = arith.constant 0 : index
    %1 = vector.load %arg2[%c0_1, %c0_2] : memref<9x32xf32, #tpu.memory_space<vmem>>, vector<9x32xf32>
    %cst = arith.constant dense<0.000000e+00> : vector<88x32xf32>
    %2 = tpu.matmul %0, %1, %cst {dimension_numbers = #tpu.dot_dimension_numbers<[1], [0], [0], [1], [0, 0, 1, 1], [], []>} : vector<88x9xf32>, vector<9x32xf32>, vector<88x32xf32> -> vector<88x32xf32>
    %c0_3 = arith.constant 0 : index
    %c0_4 = arith.constant 0 : index
    %3 = vector.load %arg3[%c0_3, %c0_4] : memref<1x32xf32, #tpu.memory_space<vmem>>, vector<1x32xf32>
    %4 = vector.broadcast %3 : vector<1x32xf32> to vector<88x32xf32>
    %5 = arith.addf %2, %4 : vector<88x32xf32>
    %c0_5 = arith.constant 0 : index
    %c0_6 = arith.constant 0 : index
    %6 = vector.load %arg4[%c0_5, %c0_6] : memref<88x32xf32, #tpu.memory_space<vmem>>, vector<88x32xf32>
    tpu.vector_store %arg4[%c0_5, %c0_6], %5 {strides = array<i32>} : memref<88x32xf32, #tpu.memory_space<vmem>>, vector<88x32xf32>,
    return
  }
  func.func @transform_0(%arg0: i32) -> (i32, i32) {
    %c0_i32 = arith.constant 0 : i32
    %c0_i32_0 = arith.constant 0 : i32
    return %arg0, %c0_i32 : i32, i32
  }
  func.func @transform_1(%arg0: i32) -> (i32, i32) {
    %c0_i32 = arith.constant 0 : i32
    %c0_i32_0 = arith.constant 0 : i32
    %c0_i32_1 = arith.constant 0 : i32
    return %c0_i32, %c0_i32_0 : i32, i32
  }
  func.func @transform_2(%arg0: i32) -> (i32, i32) {
    %c0_i32 = arith.constant 0 : i32
    %c0_i32_0 = arith.constant 0 : i32
    %c0_i32_1 = arith.constant 0 : i32
    return %c0_i32, %c0_i32_0 : i32, i32
  }
  func.func @transform_3(%arg0: i32) -> (i32, i32) {
    %c0_i32 = arith.constant 0 : i32
    %c0_i32_0 = arith.constant 0 : i32
    return %arg0, %c0_i32 : i32, i32
  }
}

</mosaic_0001>

<llo_original>
// kernel: patch_embed_ts_forward.1
$region0: #{patch_embed_ts_forward.1}
  #allocation0 [shape = 'u32[]', space=smem, size = 0x4, offset = 0x4, fixed_abs, tag = 'smem constant byte address 0x4 - core index']
  #allocation1 [shape = 'u32[144,128]{1,0:T(1,128)}', space=vmem, size = 0x12000, scoped, tag = 'internal scratch']
  %s0 = inlined_call_operand.vmem [shape: f32[344,9], index: 0, kind: input, shape index: {}]
  %s1 = inlined_call_operand.vmem [shape: f32[9,32], index: 1, kind: input, shape index: {}]
  %s2 = inlined_call_operand.vmem [shape: f32[1,32], index: 2, kind: input, shape index: {}]
  %s3 = inlined_call_operand.vmem [shape: f32[344,32], index: 3, kind: output, shape index: {}]
  %s4 = sld [smem:[#allocation0]]
  $region93: #{patch_embed_ts_forward.1} parent=0
    _
  %s6 = ssub.s32 1, %s4
  %s7 = scalar_select 0, %s6, %s4
  $region1: #{patch_embed_ts_forward.1} parent=0
    #allocation2 [shape = 'u8[90112]{0}', space=vmem, size = 0x16000, scoped, tag = 'output window, operand 0']
    loop: start=0, step=1, limit=6
    $region2: #{patch_embed_ts_forward.1} parent=1 // loop_pre_header
      _
    $region3: #{patch_embed_ts_forward.1} parent=1 // loop_header
      %s9 = sphi 0, %s13
      %p10 = scmp.ge.s32.totalorder %s9, 6
      %s19 = sphi 0, %s21
      %s22 = sphi 0, %s19
      %s23 = sphi 0, %s22
      %s39 = sphi 0, %s23
      %s43 = sphi 0, %s43
      %s45 = sphi 0, %s43
      %s46 = sphi 0, %s45
      %s60 = sphi 0, %s46
      %s64 = sphi 0, %s64
      %s66 = sphi 0, %s64
      %s67 = sphi 0, %s66
      %s81 = sphi 0, %s67
      %s87 = sphi 0, %s89
      %s90 = sphi 0, %s87
      %s91 = sphi 0, %s90
      %s107 = sphi 0, %s91
    $region4: #{patch_embed_ts_forward.1} parent=1 // loop_header_branch
      %12 = sbr.rel (%p10) target = $region8
    $region5: #{patch_embed_ts_forward.1} parent=1 // loop_body
      %s14 = ssub.s32 %s9, 1
      %s15 = ssub.s32 %s9, 2
      %s16 = sadd.s32 %s9, 1
      %s17 = ssub.s32 %s9, %s16
      %p18 = scmp.eq.s32.totalorder %s17, 0
      %s20 = sadd.s32 %s19, 1
      %s21 = scalar_select %p18, %s19, %s20
      %p24 = pneg %p18
      %p25 = scmp.eq.s32.totalorder %s9, 3
      %p26 = por %p24, %p25
      %p27 = scmp.ne.s32.totalorder %s19, %s22
      %p28 = scmp.eq.s32.totalorder %s9, 0
      %p29 = por %p27, %p28
      %p30 = scmp.ne.s32.totalorder %s19, %s22
      %p31 = scmp.eq.s32.totalorder %s14, 3
      %p32 = por %p30, %p31
      %p33 = scmp.ne.s32.totalorder %s22, %s23
      %p34 = scmp.eq.s32.totalorder %s14, 0
      %p35 = por %p33, %p34
      %p36 = scmp.ne.s32.totalorder %s22, %s23
      %p37 = scmp.eq.s32.totalorder %s15, 3
      %p38 = por %p36, %p37
      %p40 = scmp.ne.s32.totalorder %s23, %s39
      %p41 = scmp.eq.s32.totalorder %s15, 0
      %p42 = por %p40, %p41
      %s44 = sadd.s32 %s43, 1
      %p47 = scmp.eq.s32.totalorder %s9, 3
      %p48 = scmp.ne.s32.totalorder %s43, %s45
      %p49 = scmp.eq.s32.totalorder %s9, 0
      %p50 = por %p48, %p49
      %p51 = scmp.ne.s32.totalorder %s43, %s45
      %p52 = scmp.eq.s32.totalorder %s14, 3
      %p53 = por %p51, %p52
      %p54 = scmp.ne.s32.totalorder %s45, %s46
      %p55 = scmp.eq.s32.totalorder %s14, 0
      %p56 = por %p54, %p55
      %p57 = scmp.ne.s32.totalorder %s45, %s46
      %p58 = scmp.eq.s32.totalorder %s15, 3
      %p59 = por %p57, %p58
      %p61 = scmp.ne.s32.totalorder %s46, %s60
      %p62 = scmp.eq.s32.totalorder %s15, 0
      %p63 = por %p61, %p62
      %s65 = sadd.s32 %s64, 1
      %p68 = scmp.eq.s32.totalorder %s9, 3
      %p69 = scmp.ne.s32.totalorder %s64, %s66
      %p70 = scmp.eq.s32.totalorder %s9, 0
      %p71 = por %p69, %p70
      %p72 = scmp.ne.s32.totalorder %s64, %s66
      %p73 = scmp.eq.s32.totalorder %s14, 3
      %p74 = por %p72, %p73
      %p75 = scmp.ne.s32.totalorder %s66, %s67
      %p76 = scmp.eq.s32.totalorder %s14, 0
      %p77 = por %p75, %p76
      %p78 = scmp.ne.s32.totalorder %s66, %s67
      %p79 = scmp.eq.s32.totalorder %s15, 3
      %p80 = por %p78, %p79
      %p82 = scmp.ne.s32.totalorder %s67, %s81
      %p83 = scmp.eq.s32.totalorder %s15, 0
      %p84 = por %p82, %p83
      %s85 = ssub.s32 %s9, %s16
      %p86 = scmp.eq.s32.totalorder %s85, 0
      %s88 = sadd.s32 %s87, 1
      %s89 = scalar_select %p86, %s87, %s88
      %p92 = pneg %p86
      %p93 = scmp.eq.s32.totalorder %s9, 3
      %p94 = por %p92, %p93
      %p95 = scmp.ne.s32.totalorder %s87, %s90
      %p96 = scmp.eq.s32.totalorder %s9, 0
      %p97 = por %p95, %p96
      %p98 = scmp.ne.s32.totalorder %s87, %s90
      %p99 = scmp.eq.s32.totalorder %s14, 3
      %p100 = por %p98, %p99
      %p101 = scmp.ne.s32.totalorder %s90, %s91
      %p102 = scmp.eq.s32.totalorder %s14, 0
      %p103 = por %p101, %p102
      %p104 = scmp.ne.s32.totalorder %s90, %s91
      %p105 = scmp.eq.s32.totalorder %s15, 3
      %p106 = por %p104, %p105
      %p108 = scmp.ne.s32.totalorder %s91, %s107
      %p109 = scmp.eq.s32.totalorder %s15, 0
      %p110 = por %p108, %p109
      %p111 = scmp.le.s32.totalorder 1, %s9
      %p112 = scmp.lt.s32.totalorder %s9, 5
      %p113 = pnand %p111, %p112
      %p114 = pneg %p113
      // Predicated region
      $region9: #{patch_embed_ts_forward.1} parent=5 // pred_check
        _
      $region10: #{patch_embed_ts_forward.1} parent=5 // pred_check_branch
        %116 = sbr.rel (%p113) target = $region12
      $region11: #{patch_embed_ts_forward.1} parent=5 // pred_region
        %s117 = ssub.s32 %s9, 1
        // Predicated region
        $region13: #{patch_embed_ts_forward.1} parent=11 // pred_check
          %p118 = pneg %p56
        $region14: #{patch_embed_ts_forward.1} parent=11 // pred_check_branch
          %120 = sbr.rel (%p118) target = $region16
        $region15: #{patch_embed_ts_forward.1} parent=11 // pred_region
          _
        $region16: #{patch_embed_ts_forward.1} parent=11 // pred_fallthru
          _
        // Predicated region
        $region17: #{patch_embed_ts_forward.1} parent=11 // pred_check
          %p121 = pneg %p77
        $region18: #{patch_embed_ts_forward.1} parent=11 // pred_check_branch
          %123 = sbr.rel (%p121) target = $region20
        $region19: #{patch_embed_ts_forward.1} parent=11 // pred_region
          _
        $region20: #{patch_embed_ts_forward.1} parent=11 // pred_fallthru
          _
      $region12: #{patch_embed_ts_forward.1} parent=5 // pred_fallthru
        _
      %p124 = scmp.lt.s32.totalorder %s9, 4
      // Predicated region
      $region21: #{patch_embed_ts_forward.1} parent=5 // pred_check
        %p125 = pneg %p124
      $region22: #{patch_embed_ts_forward.1} parent=5 // pred_check_branch
        %127 = sbr.rel (%p125) target = $region24
      $region23: #{patch_embed_ts_forward.1} parent=5 // pred_region
        // Predicated region
        $region25: #{patch_embed_ts_forward.1} parent=23 // pred_check
          %p128 = pneg %p29
        $region26: #{patch_embed_ts_forward.1} parent=23 // pred_check_branch
          %130 = sbr.rel (%p128) target = $region28
        $region27: #{patch_embed_ts_forward.1} parent=23 // pred_region
          %s131 = smul.u32 11, %s9
          %s132 = ssub.s32 43, %s131
          %p133 = scmp.lt.s32.totalorder %s132, 11
          %s134 = scalar_select %p133, %s132, 11
          %s135 = smul.u32 128, %s134
          %p136 = scmp.lt.s32.totalorder %s131, 42
          %s137 = scalar_select %p136, %s131, 42
          %s138 = smul.addr %s137, 8
          %s139 = scalar_lea.vmem %s0, %s138
          %s140 = smul.u32 11, %s9
          %s141 = ssub.s32 43, %s140
          %p142 = scmp.lt.s32.totalorder %s141, 11
          %s143 = scalar_select %p142, %s141, 11
          %s144 = smul.u32 128, %s143
        $region28: #{patch_embed_ts_forward.1} parent=23 // pred_fallthru
          _
      $region24: #{patch_embed_ts_forward.1} parent=5 // pred_fallthru
        _
      %p145 = scmp.le.s32.totalorder 1, %s9
      %p146 = scmp.lt.s32.totalorder %s9, 5
      %p147 = pnand %p145, %p146
      %p148 = pneg %p147
      // Predicated region
      $region29: #{patch_embed_ts_forward.1} parent=5 // pred_check
        _
      $region30: #{patch_embed_ts_forward.1} parent=5 // pred_check_branch
        %150 = sbr.rel (%p147) target = $region32
      $region31: #{patch_embed_ts_forward.1} parent=5 // pred_region
        %s151 = ssub.s32 %s9, 1
        %s152 = smul.u32 11, %s14
        %s153 = ssub.s32 43, %s152
        %p154 = scmp.lt.s32.totalorder %s153, 11
        %s155 = scalar_select %p154, %s153, 11
        %s156 = smul.u32 128, %s155
        %p157 = scmp.lt.s32.totalorder %s152, 42
        %s158 = scalar_select %p157, %s152, 42
        %s159 = smul.addr %s158, 8
        %s160 = scalar_lea.vmem %s0, %s159
        %p161 = pneg %p35
        %p162 = pneg %p32
        %p163 = pneg %p56
        %p164 = pneg %p53
        %p165 = pneg %p77
        %p166 = pneg %p74
        %p167 = pneg %p103
        %p168 = pneg %p100
        %s169 = sand.u32 %s90, 1
        %s170 = sand.u32 %s90, 1
        %s171 = smul.addr %s170, 88
        %s172 = scalar_lea.vmem [#allocation2], %s171
        %s173 = smul.u32 11, %s14
        %s174 = ssub.s32 43, %s173
        %p175 = scmp.lt.s32.totalorder %s174, 11
        %s176 = scalar_select %p175, %s174, 11
        %s177 = smul.u32 128, %s176
        %p178 = scmp.lt.s32.totalorder %s173, 42
        %s179 = scalar_select %p178, %s173, 42
        %s180 = smul.addr %s179, 8
        %s181 = scalar_lea.vmem %s0, %s180
        %s182 = smul.u32 11, %s14
        %s183 = ssub.s32 43, %s182
        %p184 = scmp.lt.s32.totalorder %s183, 11
        %s185 = scalar_select %p184, %s183, 11
        %s186 = smul.u32 128, %s185
        %s187 = smul.u32 11, %s14
        %s188 = ssub.s32 43, %s187
        %p189 = scmp.lt.s32.totalorder %s188, 11
        %s190 = scalar_select %p189, %s188, 11
        %s191 = smul.u32 128, %s190
        %v192 = vld [vmem:[%s181] sm:$0xff]
        %v193 = vld [vmem:[%s181 + $0x8] sm:$0xff]
        %v194 = vld [vmem:[%s181 + $0x10] sm:$0xff]
        %v195 = vld [vmem:[%s181 + $0x18] sm:$0xff]
        %v196 = vld [vmem:[%s181 + $0x20] sm:$0xff]
        %v197 = vld [vmem:[%s181 + $0x28] sm:$0xff]
        %v198 = vld [vmem:[%s181 + $0x30] sm:$0xff]
        %v199 = vld [vmem:[%s181 + $0x38] sm:$0xff]
        %v200 = vld [vmem:[%s181 + $0x40] sm:$0xff]
        %v201 = vld [vmem:[%s181 + $0x48] sm:$0xff]
        %v202 = vld [vmem:[%s181 + $0x50] sm:$0xff]
        %v203 = vld [vmem:[%s1] sm:$0xff]
        %v204 = vld [vmem:[%s1 + $0x8] sm:$0x1]
        %v205 = vld [vmem:[%s2] sm:$0x1]
        %v207 = vlaneseq
        %v208 = vshrl.u32 %v207, 7
        %v209 = vsub.s32 0, %v208
        %v210 = vrot.slane %v205, %v209
        %vm212 = vcmask 72704
        %v214 = vsel %vm212, %v192, 0
        %v217 = vsel %vm212, %v193, 0
        %v220 = vsel %vm212, %v194, 0
        %v223 = vsel %vm212, %v195, 0
        %v226 = vsel %vm212, %v196, 0
        %v229 = vsel %vm212, %v197, 0
        %v232 = vsel %vm212, %v198, 0
        %v235 = vsel %vm212, %v199, 0
        %v238 = vsel %vm212, %v200, 0
        %v241 = vsel %vm212, %v201, 0
        %v244 = vsel %vm212, %v202, 0
        %vm246 = vcmask 1040384
        %v248 = vsel %vm246, %v204, 0
        %250 = vmatprep.subr.mxu0 0.0
        %251 = vmatpush1.msra.mxu0 %v203
        %252 = vmatprep.subr.mxu0 0.0
        %253 = vmatpush1.msra.mxu0 %v248
        %254 = vmatprep.subr.mxu0 0.0
        %255 = vmatpush1.msra.mxu0 0.0
        %256 = vmatprep.subr.mxu0 0.0
        %257 = vmatpush1.msra.mxu0 0.0
        %258 = vmatprep.subr.mxu0 0.0
        %259 = vmatpush1.msra.mxu0 0.0
        %260 = vmatprep.subr.mxu0 0.0
        %261 = vmatpush1.msra.mxu0 0.0
        %262 = vmatprep.subr.mxu0 0.0
        %263 = vmatpush1.msra.mxu0 0.0
        %264 = vmatprep.subr.mxu0 0.0
        %265 = vmatpush1.msra.mxu0 0.0
        %266 = vmatprep.subr.mxu0 0.0
        %267 = vmatpush1.msra.mxu0 0.0
        %268 = vmatprep.subr.mxu0 0.0
        %269 = vmatpush1.msra.mxu0 0.0
        %270 = vmatprep.subr.mxu0 0.0
        %271 = vmatpush1.msra.mxu0 0.0
        %272 = vmatprep.subr.mxu0 0.0
        %273 = vmatpush1.msra.mxu0 0.0
        %274 = vmatprep.subr.mxu0 0.0
        %275 = vmatpush1.msra.mxu0 0.0
        %276 = vmatprep.subr.mxu0 0.0
        %277 = vmatpush1.msra.mxu0 0.0
        %278 = vmatprep.subr.mxu0 0.0
        %279 = vmatpush1.msra.mxu0 0.0
        %280 = vmatprep.subr.mxu0 0.0
        %281 = vmatpush1.msra.mxu0 0.0
        %282 = vmatprep.subr.mxu0 0.0
        %283 = vmatpush1.msra.mxu0 0.0
        %284 = vmatprep.subr.mxu0 0.0
        %285 = vmatpush1.msra.mxu0 0.0
        %286 = vmatprep.subr.mxu0 0.0
        %287 = vmatpush1.msra.mxu0 0.0
        %288 = vmatprep.subr.mxu0 0.0
        %289 = vmatpush1.msra.mxu0 0.0
        %290 = vmatprep.subr.mxu0 0.0
        %291 = vmatpush1.msra.mxu0 0.0
        %292 = vmatprep.subr.mxu0 0.0
        %293 = vmatpush1.msra.mxu0 0.0
        %294 = vmatprep.subr.mxu0 0.0
        %295 = vmatpush1.msra.mxu0 0.0
        %296 = vmatprep.subr.mxu0 0.0
        %297 = vmatpush1.msra.mxu0 0.0
        %298 = vmatprep.subr.mxu0 0.0
        %299 = vmatpush1.msra.mxu0 0.0
        %300 = vmatprep.subr.mxu0 0.0
        %301 = vmatpush1.msra.mxu0 0.0
        %302 = vmatprep.subr.mxu0 0.0
        %303 = vmatpush1.msra.mxu0 0.0
        %304 = vmatprep.subr.mxu0 0.0
        %305 = vmatpush1.msra.mxu0 0.0
        %306 = vmatprep.subr.mxu0 0.0
        %307 = vmatpush1.msra.mxu0 0.0
        %308 = vmatprep.subr.mxu0 0.0
        %309 = vmatpush1.msra.mxu0 0.0
        %310 = vmatprep.subr.mxu0 0.0
        %311 = vmatpush1.msra.mxu0 0.0
        %312 = vmatprep.subr.mxu0 0.0
        %313 = vmatpush1.msra.mxu0 0.0
        %314 = vmatprep.mubr.f32.mxu0 0.0
        %315 = vmatmul.mubr.f32.gmra.mrb[0].mxu0 %v214
        %v316 = vpop.f32.mrb[0].mxu0
        %v317 = vadd.f32 %v210, %v316
        %v318 = vpop.f32.mrb[0].mxu0
        %319 = vmatprep.mubr.f32.mxu0 0.0
        %320 = vmatmul.mubr.f32.gmra.mrb[0].mxu0 %v217
        %v321 = vpop.f32.mrb[0].mxu0
        %v322 = vadd.f32 %v210, %v321
        %v323 = vpop.f32.mrb[0].mxu0
        %324 = vmatprep.mubr.f32.mxu0 0.0
        %325 = vmatmul.mubr.f32.gmra.mrb[0].mxu0 %v220
        %v326 = vpop.f32.mrb[0].mxu0
        %v327 = vadd.f32 %v210, %v326
        %v328 = vpop.f32.mrb[0].mxu0
        %329 = vmatprep.mubr.f32.mxu0 0.0
        %330 = vmatmul.mubr.f32.gmra.mrb[0].mxu0 %v223
        %v331 = vpop.f32.mrb[0].mxu0
        %v332 = vadd.f32 %v210, %v331
        %v333 = vpop.f32.mrb[0].mxu0
        %334 = vmatprep.mubr.f32.mxu0 0.0
        %335 = vmatmul.mubr.f32.gmra.mrb[0].mxu0 %v226
        %v336 = vpop.f32.mrb[0].mxu0
        %v337 = vadd.f32 %v210, %v336
        %v338 = vpop.f32.mrb[0].mxu0
        %339 = vmatprep.mubr.f32.mxu0 0.0
        %340 = vmatmul.mubr.f32.gmra.mrb[0].mxu0 %v229
        %v341 = vpop.f32.mrb[0].mxu0
        %v342 = vadd.f32 %v210, %v341
        %v343 = vpop.f32.mrb[0].mxu0
        %344 = vmatprep.mubr.f32.mxu0 0.0
        %345 = vmatmul.mubr.f32.gmra.mrb[0].mxu0 %v232
        %v346 = vpop.f32.mrb[0].mxu0
        %v347 = vadd.f32 %v210, %v346
        %v348 = vpop.f32.mrb[0].mxu0
        %349 = vmatprep.mubr.f32.mxu0 0.0
        %350 = vmatmul.mubr.f32.gmra.mrb[0].mxu0 %v235
        %v351 = vpop.f32.mrb[0].mxu0
        %v352 = vadd.f32 %v210, %v351
        %v353 = vpop.f32.mrb[0].mxu0
        %354 = vmatprep.mubr.f32.mxu0 0.0
        %355 = vmatmul.mubr.f32.gmra.mrb[0].mxu0 %v238
        %v356 = vpop.f32.mrb[0].mxu0
        %v357 = vadd.f32 %v210, %v356
        %v358 = vpop.f32.mrb[0].mxu0
        %359 = vmatprep.mubr.f32.mxu0 0.0
        %360 = vmatmul.mubr.f32.gmra.mrb[0].mxu0 %v241
        %v361 = vpop.f32.mrb[0].mxu0
        %v362 = vadd.f32 %v210, %v361
        %v363 = vpop.f32.mrb[0].mxu0
        %364 = vmatprep.mubr.f32.mxu0 0.0
        %365 = vmatmul.mubr.f32.gmra.mrb[0].mxu0 %v244
        %v366 = vpop.f32.mrb[0].mxu0
        %v367 = vadd.f32 %v210, %v366
        %v368 = vpop.f32.mrb[0].mxu0
        %369 = vdwg.mxu0
        %vm370 = vcmask 261120
        %371 = vst.msk [vmem:[%s172] sm:$0xff] %vm370, %v317
        %372 = vst.msk [vmem:[%s172 + $0x8] sm:$0xff] %vm370, %v322
        %373 = vst.msk [vmem:[%s172 + $0x10] sm:$0xff] %vm370, %v327
        %374 = vst.msk [vmem:[%s172 + $0x18] sm:$0xff] %vm370, %v332
        %375 = vst.msk [vmem:[%s172 + $0x20] sm:$0xff] %vm370, %v337
        %376 = vst.msk [vmem:[%s172 + $0x28] sm:$0xff] %vm370, %v342
        %377 = vst.msk [vmem:[%s172 + $0x30] sm:$0xff] %vm370, %v347
        %378 = vst.msk [vmem:[%s172 + $0x38] sm:$0xff] %vm370, %v352
        %379 = vst.msk [vmem:[%s172 + $0x40] sm:$0xff] %vm370, %v357
        %380 = vst.msk [vmem:[%s172 + $0x48] sm:$0xff] %vm370, %v362
        %381 = vst.msk [vmem:[%s172 + $0x50] sm:$0xff] %vm370, %v367
        %s382 = sand.u32 %s90, 1
        %s383 = sand.u32 %s90, 1
        %s384 = smul.addr %s383, 88
        %s385 = scalar_lea.vmem [#allocation2], %s384
        // Predicated region
        $region33: #{patch_embed_ts_forward.1} parent=31 // pred_check
          %p386 = pneg %p100
        $region34: #{patch_embed_ts_forward.1} parent=31 // pred_check_branch
          %388 = sbr.rel (%p386) target = $region36
        $region35: #{patch_embed_ts_forward.1} parent=31 // pred_region
          %s389 = smul.u32 11, %s14
          %s390 = ssub.s32 43, %s389
          %p391 = scmp.lt.s32.totalorder %s390, 11
          %s392 = scalar_select %p391, %s390, 11
          %s393 = smul.u32 128, %s392
          %p394 = scmp.ne.s32.totalorder 0, %s393
          %s395 = smul.addr %s389, 8
          %s396 = scalar_lea.vmem %s3, %s395
          // Predicated region
          $region37: #{patch_embed_ts_forward.1} parent=35 // pred_check
            %p397 = pneg %p394
          $region38: #{patch_embed_ts_forward.1} parent=35 // pred_check_branch
            %399 = sbr.rel (%p397) target = $region40
          $region39: #{patch_embed_ts_forward.1} parent=35 // pred_region
            // Predicated region
            $region41: #{patch_embed_ts_forward.1} parent=39 // pred_check
              _
            $region42: #{patch_embed_ts_forward.1} parent=39 // pred_check_branch
              %401 = sbr.rel (0) target = $region44
            $region43: #{patch_embed_ts_forward.1} parent=39 // pred_region
              // Predicated region
              $region63: #{patch_embed_ts_forward.1} parent=43 // pred_check
                _
              $region64: #{patch_embed_ts_forward.1} parent=43 // pred_check_branch
                %471 = sbr.rel (0) target = $region66
              $region65: #{patch_embed_ts_forward.1} parent=43 // pred_region
                %s472 = sdiv.u32.pop %s392, 11
                %s473 = srem.u32.pop %s392, 11
                // While loop
                $region67: #{patch_embed_ts_forward.1} parent=65 // loop_pre_header
                  _
                $region68: #{patch_embed_ts_forward.1} parent=65 // loop_header
                  %s475 = sphi 0, %s477
                  %p476 = scmp.ge.s32.totalorder %s475, %s472
                  %s480 = sphi 0, %s507
                  %s481 = sphi %s385, %s510
                  %s482 = sphi %s396, %s511
                $region69: #{patch_embed_ts_forward.1} parent=65 // loop_header_branch
                  %479 = sbr.rel (%p476) target = $region73
                $region70: #{patch_embed_ts_forward.1} parent=65 // loop_body
                  %v483 = vld [vmem:[%s481] sm:$0xff]
                  %484 = vst [vmem:[%s482] sm:$0xff] %v483
                  %v485 = vld [vmem:[%s481 + $0x8] sm:$0xff]
                  %486 = vst [vmem:[%s482 + $0x8] sm:$0xff] %v485
                  %v487 = vld [vmem:[%s481 + $0x10] sm:$0xff]
                  %488 = vst [vmem:[%s482 + $0x10] sm:$0xff] %v487
                  %v489 = vld [vmem:[%s481 + $0x18] sm:$0xff]
                  %490 = vst [vmem:[%s482 + $0x18] sm:$0xff] %v489
                  %v491 = vld [vmem:[%s481 + $0x20] sm:$0xff]
                  %492 = vst [vmem:[%s482 + $0x20] sm:$0xff] %v491
                  %v493 = vld [vmem:[%s481 + $0x28] sm:$0xff]
                  %494 = vst [vmem:[%s482 + $0x28] sm:$0xff] %v493
                  %v495 = vld [vmem:[%s481 + $0x30] sm:$0xff]
                  %496 = vst [vmem:[%s482 + $0x30] sm:$0xff] %v495
                  %v497 = vld [vmem:[%s481 + $0x38] sm:$0xff]
                  %498 = vst [vmem:[%s482 + $0x38] sm:$0xff] %v497
                  %v499 = vld [vmem:[%s481 + $0x40] sm:$0xff]
                  %500 = vst [vmem:[%s482 + $0x40] sm:$0xff] %v499
                  %v501 = vld [vmem:[%s481 + $0x48] sm:$0xff]
                  %502 = vst [vmem:[%s482 + $0x48] sm:$0xff] %v501
                  %v503 = vld [vmem:[%s481 + $0x50] sm:$0xff]
                  %504 = vst [vmem:[%s482 + $0x50] sm:$0xff] %v503
                  %s505 = sadd.s32 1, %s480
                  %p506 = scmp.ge.s32.totalorder %s505, %s472
                  %s507 = scalar_select %p506, 0, %s505
                  %s508 = smul.u32 %s507, 88
                  %s509 = smul.u32 %s507, 88
                  %s510 = scalar_lea.vmem %s385, %s508 [#allocation2]
                  %s511 = scalar_lea.vmem %s396, %s509
                $region71: #{patch_embed_ts_forward.1} parent=65 // loop_footer
                  %s477 = sadd.s32 %s475, 1
                $region72: #{patch_embed_ts_forward.1} parent=65 // loop_footer_branch
                  %474 = sbr.rel target = $region68
                $region73: #{patch_embed_ts_forward.1} parent=65 // loop_exit
                  _
                %s512 = sdiv.u32.pop %s392, 11
                %s513 = srem.u32.pop %s392, 11
                %s514 = smul.u32 %s512, 11
                %s515 = smul.u32 8, %s514
                %s516 = scalar_lea.vmem %s385, %s515 [#allocation2]
                %s517 = smul.u32 8, %s514
                %s518 = scalar_lea.vmem %s396, %s517
                // While loop
                $region74: #{patch_embed_ts_forward.1} parent=65 // loop_pre_header
                  _
                $region75: #{patch_embed_ts_forward.1} parent=65 // loop_header
                  %s520 = sphi 0, %s522
                  %p521 = scmp.ge.s32.totalorder %s520, %s513
                  %s525 = sphi 0, %s532
                  %s526 = sphi %s516, %s535
                  %s527 = sphi %s518, %s536
                $region76: #{patch_embed_ts_forward.1} parent=65 // loop_header_branch
                  %524 = sbr.rel (%p521) target = $region80
                $region77: #{patch_embed_ts_forward.1} parent=65 // loop_body
                  %v528 = vld [vmem:[%s526] sm:$0xff]
                  %529 = vst [vmem:[%s527] sm:$0xff] %v528
                  %s530 = sadd.s32 1, %s525
                  %p531 = scmp.ge.s32.totalorder %s530, %s513
                  %s532 = scalar_select %p531, 0, %s530
                  %s533 = smul.u32 %s532, 8
                  %s534 = smul.u32 %s532, 8
                  %s535 = scalar_lea.vmem %s516, %s533 [#allocation2]
                  %s536 = scalar_lea.vmem %s518, %s534
                $region78: #{patch_embed_ts_forward.1} parent=65 // loop_footer
                  %s522 = sadd.s32 %s520, 1
                $region79: #{patch_embed_ts_forward.1} parent=65 // loop_footer_branch
                  %519 = sbr.rel target = $region75
                $region80: #{patch_embed_ts_forward.1} parent=65 // loop_exit
                  _
              $region66: #{patch_embed_ts_forward.1} parent=43 // pred_fallthru
                _
              // Predicated region
              $region81: #{patch_embed_ts_forward.1} parent=43 // pred_check
                _
              $region82: #{patch_embed_ts_forward.1} parent=43 // pred_check_branch
                %538 = sbr.rel target = $region84
              $region83: #{patch_embed_ts_forward.1} parent=43 // pred_region
                _
              $region84: #{patch_embed_ts_forward.1} parent=43 // pred_fallthru
                _
            $region44: #{patch_embed_ts_forward.1} parent=39 // pred_fallthru
              _
            // Predicated region
            $region45: #{patch_embed_ts_forward.1} parent=39 // pred_check
              _
            $region46: #{patch_embed_ts_forward.1} parent=39 // pred_check_branch
              %403 = sbr.rel target = $region48
            $region47: #{patch_embed_ts_forward.1} parent=39 // pred_region
              %s405 = sdiv.u32.pop %s392, 11
              %s406 = srem.u32.pop %s392, 11
              // While loop
              $region49: #{patch_embed_ts_forward.1} parent=47 // loop_pre_header
                _
              $region50: #{patch_embed_ts_forward.1} parent=47 // loop_header
                %s408 = sphi 0, %s410
                %p409 = scmp.ge.s32.totalorder %s408, %s405
                %s413 = sphi 0, %s440
                %s414 = sphi %s385, %s443
                %s415 = sphi %s396, %s444
              $region51: #{patch_embed_ts_forward.1} parent=47 // loop_header_branch
                %412 = sbr.rel (%p409) target = $region55
              $region52: #{patch_embed_ts_forward.1} parent=47 // loop_body
                %v416 = vld [vmem:[%s414] sm:$0xff]
                %417 = vst [vmem:[%s415] sm:$0xff] %v416
                %v418 = vld [vmem:[%s414 + $0x8] sm:$0xff]
                %419 = vst [vmem:[%s415 + $0x8] sm:$0xff] %v418
                %v420 = vld [vmem:[%s414 + $0x10] sm:$0xff]
                %421 = vst [vmem:[%s415 + $0x10] sm:$0xff] %v420
                %v422 = vld [vmem:[%s414 + $0x18] sm:$0xff]
                %423 = vst [vmem:[%s415 + $0x18] sm:$0xff] %v422
                %v424 = vld [vmem:[%s414 + $0x20] sm:$0xff]
                %425 = vst [vmem:[%s415 + $0x20] sm:$0xff] %v424
                %v426 = vld [vmem:[%s414 + $0x28] sm:$0xff]
                %427 = vst [vmem:[%s415 + $0x28] sm:$0xff] %v426
                %v428 = vld [vmem:[%s414 + $0x30] sm:$0xff]
                %429 = vst [vmem:[%s415 + $0x30] sm:$0xff] %v428
                %v430 = vld [vmem:[%s414 + $0x38] sm:$0xff]
                %431 = vst [vmem:[%s415 + $0x38] sm:$0xff] %v430
                %v432 = vld [vmem:[%s414 + $0x40] sm:$0xff]
                %433 = vst [vmem:[%s415 + $0x40] sm:$0xff] %v432
                %v434 = vld [vmem:[%s414 + $0x48] sm:$0xff]
                %435 = vst [vmem:[%s415 + $0x48] sm:$0xff] %v434
                %v436 = vld [vmem:[%s414 + $0x50] sm:$0xff]
                %437 = vst [vmem:[%s415 + $0x50] sm:$0xff] %v436
                %s438 = sadd.s32 1, %s413
                %p439 = scmp.ge.s32.totalorder %s438, %s405
                %s440 = scalar_select %p439, 0, %s438
                %s441 = smul.u32 %s440, 88
                %s442 = smul.u32 %s440, 88
                %s443 = scalar_lea.vmem %s385, %s441 [#allocation2]
                %s444 = scalar_lea.vmem %s396, %s442
              $region53: #{patch_embed_ts_forward.1} parent=47 // loop_footer
                %s410 = sadd.s32 %s408, 1
              $region54: #{patch_embed_ts_forward.1} parent=47 // loop_footer_branch
                %407 = sbr.rel target = $region50
              $region55: #{patch_embed_ts_forward.1} parent=47 // loop_exit
                _
              %s445 = sdiv.u32.pop %s392, 11
              %s446 = srem.u32.pop %s392, 11
              %s447 = smul.u32 %s445, 11
              %s448 = smul.u32 8, %s447
              %s449 = scalar_lea.vmem %s385, %s448 [#allocation2]
              %s450 = smul.u32 8, %s447
              %s451 = scalar_lea.vmem %s396, %s450
              // While loop
              $region56: #{patch_embed_ts_forward.1} parent=47 // loop_pre_header
                _
              $region57: #{patch_embed_ts_forward.1} parent=47 // loop_header
                %s453 = sphi 0, %s455
                %p454 = scmp.ge.s32.totalorder %s453, %s446
                %s458 = sphi 0, %s465
                %s459 = sphi %s449, %s468
                %s460 = sphi %s451, %s469
              $region58: #{patch_embed_ts_forward.1} parent=47 // loop_header_branch
                %457 = sbr.rel (%p454) target = $region62
              $region59: #{patch_embed_ts_forward.1} parent=47 // loop_body
                %v461 = vld [vmem:[%s459] sm:$0xff]
                %462 = vst [vmem:[%s460] sm:$0xff] %v461
                %s463 = sadd.s32 1, %s458
                %p464 = scmp.ge.s32.totalorder %s463, %s446
                %s465 = scalar_select %p464, 0, %s463
                %s466 = smul.u32 %s465, 8
                %s467 = smul.u32 %s465, 8
                %s468 = scalar_lea.vmem %s449, %s466 [#allocation2]
                %s469 = scalar_lea.vmem %s451, %s467
              $region60: #{patch_embed_ts_forward.1} parent=47 // loop_footer
                %s455 = sadd.s32 %s453, 1
              $region61: #{patch_embed_ts_forward.1} parent=47 // loop_footer_branch
                %452 = sbr.rel target = $region57
              $region62: #{patch_embed_ts_forward.1} parent=47 // loop_exit
                _
            $region48: #{patch_embed_ts_forward.1} parent=39 // pred_fallthru
              _
          $region40: #{patch_embed_ts_forward.1} parent=35 // pred_fallthru
            _
          %539 = vnop
        $region36: #{patch_embed_ts_forward.1} parent=31 // pred_fallthru
          _
      $region32: #{patch_embed_ts_forward.1} parent=5 // pred_fallthru
        _
      %p540 = scmp.le.s32.totalorder 2, %s9
      // Predicated region
      $region85: #{patch_embed_ts_forward.1} parent=5 // pred_check
        %p541 = pneg %p540
      $region86: #{patch_embed_ts_forward.1} parent=5 // pred_check_branch
        %543 = sbr.rel (%p541) target = $region88
      $region87: #{patch_embed_ts_forward.1} parent=5 // pred_region
        %s544 = ssub.s32 %s9, 2
        // Predicated region
        $region89: #{patch_embed_ts_forward.1} parent=87 // pred_check
          %p545 = pneg %p106
        $region90: #{patch_embed_ts_forward.1} parent=87 // pred_check_branch
          %547 = sbr.rel (%p545) target = $region92
        $region91: #{patch_embed_ts_forward.1} parent=87 // pred_region
          %s548 = sand.u32 %s91, 1
          %s549 = sand.u32 %s91, 1
          %s550 = smul.addr %s549, 88
          %s551 = scalar_lea.vmem [#allocation2], %s550
        $region92: #{patch_embed_ts_forward.1} parent=87 // pred_fallthru
          _
      $region88: #{patch_embed_ts_forward.1} parent=5 // pred_fallthru
        _
    $region6: #{patch_embed_ts_forward.1} parent=1 // loop_footer
      %s13 = sadd.s32 1, %s9
    $region7: #{patch_embed_ts_forward.1} parent=1 // loop_footer_branch
      %8 = sbr.rel target = $region3
    $region8: #{patch_embed_ts_forward.1} parent=1 // loop_exit
      _

</llo_original>
